<compile_context>
chip_gen: v7x
topology: tpu7x:2x2x1
jax: 0.10.0
libtpu: 0.0.40
codegen_flags: <defaults>
</compile_context>

<pallas_src>
import functools

import numpy as np
import jax
import jax.numpy as jnp
from jax.experimental import pallas as pl
from jax.experimental.pallas import tpu as pltpu


def _pick_row_block(H, WP, target=384):
    """Largest divisor RB of H with RB*WP <= target (keeps MXU M-dim ~128-384)."""
    best = 1
    for d in range(1, H + 1):
        if H % d == 0 and d * WP <= target:
            best = d
    return best


def _pick_row_block_aligned(H, WP, target=1024):
    """Largest divisor RB of H with RB*WP <= target and RB*WP % 8 == 0 (so the
    block's second-minor dim satisfies the (8,128) constraint).  Falls back to
    the full image (always legal since block == full dim)."""
    best = None
    for d in range(1, H + 1):
        if H % d == 0 and d * WP <= target and (d * WP) % 8 == 0:
            best = d
    return best if best is not None else H


def _halo_col_mask(H, WP):
    m = np.ones((H, WP), np.float32)
    m[:, 0] = 0.0
    m[:, WP - 1] = 0.0
    return jnp.asarray(m.reshape(H * WP, 1))


# ----------------------------------------------------------------------------
# First layer: Conv3x3(Cin=3) + bias + ReLU as a single im2col matmul (K=27).
# ----------------------------------------------------------------------------
def _conv1_im2col_kernel(x_ref, w_ref, b_ref, mask_ref, o_ref):
    # x_ref: (1, M, 27) bf16 im2col patches; w_ref: (27, Cout) bf16
    # b_ref: (1, Cout) f32; mask_ref: (M, 1) f32; o_ref: (1, M, Cout) bf16
    acc = jnp.dot(x_ref[0], w_ref[...], preferred_element_type=jnp.float32)
    out = jnp.maximum(acc + b_ref[...], 0.0) * mask_ref[...]
    o_ref[0] = out.astype(o_ref.dtype)


def conv3x3_im2col_relu(xcol, w27, b, H, W):
    """xcol: (B, H*(W+2), 27) bf16; w27: (27, Cout) bf16; b: (Cout,) f32."""
    B, HWp, K = xcol.shape
    WP = W + 2
    assert HWp == H * WP and K == 27
    Cout = w27.shape[-1]
    RB = _pick_row_block_aligned(H, WP)
    mask = _halo_col_mask(H, WP)

    return pl.pallas_call(
        _conv1_im2col_kernel,
        out_shape=jax.ShapeDtypeStruct((B, H * WP, Cout), jnp.bfloat16),
        grid_spec=pltpu.PrefetchScalarGridSpec(
            num_scalar_prefetch=0,
            grid=(B, H // RB),
            in_specs=[
                pl.BlockSpec((1, RB * WP, 27), lambda n, r: (n, r, 0)),
                pl.BlockSpec((27, Cout), lambda n, r: (0, 0)),
                pl.BlockSpec((1, Cout), lambda n, r: (0, 0)),
                pl.BlockSpec((RB * WP, 1), lambda n, r: (r, 0)),
            ],
            out_specs=pl.BlockSpec((1, RB * WP, Cout), lambda n, r: (n, r, 0)),
        ),
        compiler_params=pltpu.CompilerParams(
            dimension_semantics=("parallel", "parallel"),
            vmem_limit_bytes=48 * 1024 * 1024,
        ),
    )(xcol, w27, b.reshape(1, Cout), mask)


# ----------------------------------------------------------------------------
# Generic fused Conv3x3 (stride 1, pad 1) + bias + ReLU on the halo-padded flat
# layout (used for every layer with Cin >= 64).
# ----------------------------------------------------------------------------
def _conv3x3_relu_kernel(x_ref, w_ref, b_ref, mask_ref, o_ref, xpad_ref,
                         *, H, WP, Cin, TC, RB):
    # x_ref   : (1, H*WP, Cin)   bf16, rows carry zero halo cols 0 and WP-1
    # w_ref   : (3, 3, Cin, TC)  bf16
    # b_ref   : (1, TC)          f32
    # mask_ref: (H*WP, 1)        f32, 0.0 on halo columns, 1.0 elsewhere
    # o_ref   : (1, H*WP, TC)    bf16
    # xpad_ref: ((H+4)*WP, Cin)  bf16 scratch = input with 2 extra zero rows
    #                            top/bottom (gives the vertical conv halo).
    # The scratch fill only has to happen once per input block (batch element);
    # gate it on the Cout-tile grid index (innermost, "arbitrary" axis).
    @pl.when(pl.program_id(1) == 0)
    def _fill_scratch():
        zero_margin = jnp.zeros((2 * WP, Cin), xpad_ref.dtype)
        xpad_ref[pl.ds(0, 2 * WP), :] = zero_margin
        xpad_ref[pl.ds((H + 2) * WP, 2 * WP), :] = zero_margin
        xpad_ref[pl.ds(2 * WP, H * WP), :] = x_ref[0]

    bias = b_ref[...]                       # (1, TC) f32
    M = RB * WP
    # Static loop over row blocks (a single block at these test sizes).
    for rb in range(H // RB):
        r0 = rb * RB
        acc = jnp.zeros((M, TC), jnp.float32)
        for dy in range(3):
            for dx in range(3):
                # Contiguous flat window covering RB output rows for tap (dy,dx);
                # the zero halo columns/rows supply the conv zero padding.
                start = (r0 + 1 + dy) * WP + (dx - 1)
                patch = xpad_ref[pl.ds(start, M), :]            # (M, Cin) bf16
                acc = acc + jnp.dot(patch, w_ref[dy, dx],
                                    preferred_element_type=jnp.float32)
        out = jnp.maximum(acc + bias, 0.0)
        out = out * mask_ref[pl.ds(r0 * WP, M), :]              # re-zero halo cols
        o_ref[0, pl.ds(r0 * WP, M), :] = out.astype(o_ref.dtype)


def conv3x3_relu(h, w, b, H, W):
    """h: (B, H*(W+2), Cin) bf16 halo-padded; w: (3,3,Cin,Cout) bf16; b: (Cout,) f32."""
    B, HWp, Cin = h.shape
    WP = W + 2
    assert HWp == H * WP
    Cout = w.shape[-1]
    TC = min(Cout, 256)                    # Cout tile (multiple of 128 when tiled)
    assert Cout % TC == 0
    CT = Cout // TC
    RB = _pick_row_block(H, WP)
    mask = _halo_col_mask(H, WP)

    kernel = functools.partial(_conv3x3_relu_kernel,
                               H=H, WP=WP, Cin=Cin, TC=TC, RB=RB)
    return pl.pallas_call(
        kernel,
        out_shape=jax.ShapeDtypeStruct((B, H * WP, Cout), jnp.bfloat16),
        grid_spec=pltpu.PrefetchScalarGridSpec(
            num_scalar_prefetch=0,
            grid=(B, CT),
            in_specs=[
                pl.BlockSpec((1, H * WP, Cin), lambda n, c: (n, 0, 0)),
                pl.BlockSpec((3, 3, Cin, TC), lambda n, c: (0, 0, 0, c)),
                pl.BlockSpec((1, TC), lambda n, c: (0, c)),
                pl.BlockSpec((H * WP, 1), lambda n, c: (0, 0)),
            ],
            out_specs=pl.BlockSpec((1, H * WP, TC), lambda n, c: (n, 0, c)),
            scratch_shapes=[pltpu.VMEM(((H + 4) * WP, Cin), jnp.bfloat16)],
        ),
        compiler_params=pltpu.CompilerParams(
            # Batch axis parallel (megacore); Cout-tile axis must be arbitrary so
            # the pl.when-gated scratch fill always executes before it is used.
            dimension_semantics=("parallel", "arbitrary"),
            vmem_limit_bytes=48 * 1024 * 1024,   # safe on v7x's 64 MiB VMEM
        ),
    )(h, w, b.reshape(1, Cout), mask)


# ----------------------------------------------------------------------------
# MaxPool 2x2 stride 2 on the halo-padded flat layout.  C stays the full lane
# dimension (no sub-128 lane splits); the output gets fresh zero halo columns.
# ----------------------------------------------------------------------------
def _maxpool2x2_kernel(x_ref, o_ref, *, Wo, WPo):
    # x_ref: (1, Ho, 2, WP, C) bf16; o_ref: (1, Ho, WPo, C) bf16
    top = x_ref[0, :, 0, :, :]              # rows 0,2,4,...
    bot = x_ref[0, :, 1, :, :]              # rows 1,3,5,...
    vert = jnp.maximum(top, bot)            # (Ho, WP, C)
    Ho, C = o_ref.shape[1], o_ref.shape[3]
    zcol = jnp.zeros((Ho, 1, C), o_ref.dtype)
    o_ref[0, :, 0:1, :] = zcol              # fresh zero halo columns only
    o_ref[0, :, WPo - 1:WPo, :] = zcol
    for j in range(Wo):                     # pair adjacent real columns
        a = vert[:, 2 * j + 1:2 * j + 2, :]
        b = vert[:, 2 * j + 2:2 * j + 3, :]
        o_ref[0, :, j + 1:j + 2, :] = jnp.maximum(a, b)


def maxpool2x2(h, H, W, C):
    """h: (B, H*(W+2), C) bf16 halo-padded -> (B, (H//2)*((W//2)+2), C)."""
    B = h.shape[0]
    WP = W + 2
    Ho, Wo = H // 2, W // 2
    WPo = Wo + 2
    xr = h.reshape(B, Ho, 2, WP, C)         # contiguous (free) reshape
    kernel = functools.partial(_maxpool2x2_kernel, Wo=Wo, WPo=WPo)
    out = pl.pallas_call(
        kernel,
        out_shape=jax.ShapeDtypeStruct((B, Ho, WPo, C), jnp.bfloat16),
        grid_spec=pltpu.PrefetchScalarGridSpec(
            num_scalar_prefetch=0,
            grid=(B,),
            in_specs=[pl.BlockSpec((1, Ho, 2, WP, C),
                                   lambda n: (n, 0, 0, 0, 0))],
            out_specs=pl.BlockSpec((1, Ho, WPo, C), lambda n: (n, 0, 0, 0)),
        ),
        compiler_params=pltpu.CompilerParams(
            dimension_semantics=("parallel",),
            vmem_limit_bytes=48 * 1024 * 1024,
        ),
    )(xr)
    return out.reshape(B, Ho * WPo, C)


# ----------------------------------------------------------------------------
# VGG16 feature extractor (slices 1..5 of torchvision vgg16.features).
# ----------------------------------------------------------------------------
VGG_CFG = [
    [(3, 64), (64, 64)],                       # slice1 -> h_relu1_2
    [(64, 128), (128, 128)],                   # slice2 -> h_relu2_2
    [(128, 256), (256, 256), (256, 256)],      # slice3 -> h_relu3_3
    [(256, 512), (512, 512), (512, 512)],      # slice4 -> h_relu4_3
    [(512, 512), (512, 512), (512, 512)],      # slice5 -> h_relu5_3
]


def init_params(key):
    """Deterministic synthetic parameters with the exact VGG16 conv shapes."""
    params = []
    for stage in VGG_CFG:
        sp = []
        for cin, cout in stage:
            key, kw, kb = jax.random.split(key, 3)
            fan_in = 9 * cin
            w = (jax.random.normal(kw, (3, 3, cin, cout), jnp.float32)
                 * ((2.0 / fan_in) ** 0.5) * 0.5).astype(jnp.bfloat16)
            b = jax.random.normal(kb, (cout,), jnp.float32) * 0.01
            sp.append((w, b))
        params.append(sp)
    return params


def vgg16_features(x_nchw, params):
    """Replicates vgg16.forward: returns [h_relu1_2, h_relu2_2, h_relu3_3,
    h_relu4_3, h_relu5_3], each NCHW float32 like the PyTorch module."""
    x = jnp.transpose(x_nchw, (0, 2, 3, 1)).astype(jnp.float32)   # NCHW -> NHWC
    B, H, W, _ = x.shape
    WP = W + 2

    # conv1_1 via wrapper-side im2col (layout plumbing only, 3-channel input is
    # tiny): row (r*WP + c) holds the 27-value 3x3 neighborhood of output (r, c);
    # padding supplies the conv zeros, halo columns are masked to zero in-kernel.
    xp = jnp.pad(x, ((0, 0), (1, 1), (2, 2), (0, 0)))             # (B, H+2, W+4, 3)
    taps = [xp[:, dy:dy + H, dx:dx + WP, :]
            for dy in range(3) for dx in range(3)]
    xcol = jnp.concatenate(taps, axis=-1)                         # (B, H, WP, 27)
    xcol = xcol.reshape(B, H * WP, 27).astype(jnp.bfloat16)
    w0, b0 = params[0][0]
    h = conv3x3_im2col_relu(xcol, w0.reshape(27, w0.shape[-1]), b0, H, W)

    feats = []
    for si, stage in enumerate(params):
        if si > 0:
            cin0 = stage[0][0].shape[2]
            h = maxpool2x2(h, H, W, cin0)      # MaxPool2d(kernel_size=2, stride=2)
            H //= 2
            W //= 2
        convs = stage[1:] if si == 0 else stage
        for (w_, b_) in convs:
            h = conv3x3_relu(h, w_, b_, H, W)  # Conv2d(3x3, pad=1) + ReLU
        cout = stage[-1][0].shape[3]
        f = h.reshape(B, H, W + 2, cout)[:, :, 1:W + 1, :]        # strip halo cols
        feats.append(jnp.transpose(f, (0, 3, 1, 2)).astype(jnp.float32))  # NCHW
    return feats


if __name__ == "__main__":
    key = jax.random.PRNGKey(0)
    kx, kp = jax.random.split(key)

    # Small NCHW input consistent with the module (3 input channels).
    x = jax.random.normal(kx, (2, 3, 16, 16), jnp.float32)
    params = init_params(kp)

    feats = vgg16_features(x, params)
    feats = jax.block_until_ready(feats)

    expected = [(2, 64, 16, 16), (2, 128, 8, 8), (2, 256, 4, 4),
                (2, 512, 2, 2), (2, 512, 1, 1)]
    got = [tuple(map(int, f.shape)) for f in feats]
    assert got == expected, (got, expected)
    assert all(bool(jnp.all(jnp.isfinite(f))) for f in feats)

    print("KERNEL_OK")
</pallas_src>

<mosaic_0001>
module attributes {stable_mosaic.version = 11 : i64} {
  func.func @_conv1_im2col_kernel(%arg0: i32, %arg1: i32, %arg2: memref<1x288x27xbf16, #tpu.memory_space<vmem>>, %arg3: memref<27x64xbf16, #tpu.memory_space<vmem>>, %arg4: memref<1x64xf32, #tpu.memory_space<vmem>>, %arg5: memref<288x1xf32, #tpu.memory_space<vmem>>, %arg6: memref<1x288x64xbf16, #tpu.memory_space<vmem>>) attributes {dimension_semantics = [#tpu.dimension_semantics<parallel>, #tpu.dimension_semantics<parallel>], iteration_bounds = array<i64: 2, 1>, scalar_prefetch = 0 : i64, scratch_operands = 0 : i64, tpu.core_type = #tpu.core_type<tc>, window_params = [{transform_indices = @transform_0, window_bounds = array<i64: 1, 288, 27>}, {pipeline_mode = #tpu.pipeline_mode<synchronous>, transform_indices = @transform_1, window_bounds = array<i64: 27, 64>}, {pipeline_mode = #tpu.pipeline_mode<synchronous>, transform_indices = @transform_2, window_bounds = array<i64: 1, 64>}, {transform_indices = @transform_3, window_bounds = array<i64: 288, 1>}, {transform_indices = @transform_4, window_bounds = array<i64: 1, 288, 64>}]} {
    %c0 = arith.constant 0 : index
    %c0_0 = arith.constant 0 : index
    %c0_1 = arith.constant 0 : index
    %0 = vector.load %arg2[%c0, %c0_0, %c0_1] : memref<1x288x27xbf16, #tpu.memory_space<vmem>>, vector<1x288x27xbf16>
    %1 = vector.shape_cast %0 : vector<1x288x27xbf16> to vector<288x27xbf16>
    %c0_2 = arith.constant 0 : index
    %c0_3 = arith.constant 0 : index
    %2 = vector.load %arg3[%c0_2, %c0_3] : memref<27x64xbf16, #tpu.memory_space<vmem>>, vector<27x64xbf16>
    %cst = arith.constant dense<0.000000e+00> : vector<288x64xf32>
    %3 = tpu.matmul %1, %2, %cst {dimension_numbers = #tpu.dot_dimension_numbers<[1], [0], [0], [1], [0, 0, 1, 1], [], []>} : vector<288x27xbf16>, vector<27x64xbf16>, vector<288x64xf32> -> vector<288x64xf32>
    %c0_4 = arith.constant 0 : index
    %c0_5 = arith.constant 0 : index
    %4 = vector.load %arg4[%c0_4, %c0_5] : memref<1x64xf32, #tpu.memory_space<vmem>>, vector<1x64xf32>
    %5 = vector.broadcast %4 : vector<1x64xf32> to vector<288x64xf32>
    %6 = arith.addf %3, %5 : vector<288x64xf32>
    %cst_6 = arith.constant 0.000000e+00 : f32
    %7 = vector.broadcast %cst_6 : f32 to vector<288x64xf32>
    %8 = arith.maximumf %6, %7 : vector<288x64xf32>
    %c0_7 = arith.constant 0 : index
    %c0_8 = arith.constant 0 : index
    %9 = vector.load %arg5[%c0_7, %c0_8] : memref<288x1xf32, #tpu.memory_space<vmem>>, vector<288x1xf32>
    %10 = vector.broadcast %9 : vector<288x1xf32> to vector<288x64xf32>
    %11 = arith.mulf %8, %10 : vector<288x64xf32>
    %12 = arith.truncf %11 : vector<288x64xf32> to vector<288x64xbf16>
    %c0_9 = arith.constant 0 : index
    %c0_10 = arith.constant 0 : index
    %c0_11 = arith.constant 0 : index
    %13 = vector.load %arg6[%c0_9, %c0_10, %c0_11] : memref<1x288x64xbf16, #tpu.memory_space<vmem>>, vector<1x288x64xbf16>
    %14 = vector.shape_cast %13 : vector<1x288x64xbf16> to vector<288x64xbf16>
    %15 = vector.shape_cast %12 : vector<288x64xbf16> to vector<1x288x64xbf16>
    tpu.vector_store %arg6[%c0_9, %c0_10, %c0_11], %15 {strides = array<i32>} : memref<1x288x64xbf16, #tpu.memory_space<vmem>>, vector<1x288x64xbf16>,
    return
  }
  func.func @transform_0(%arg0: i32, %arg1: i32) -> (i32, i32, i32) {
    %c0_i32 = arith.constant 0 : i32
    %c0_i32_0 = arith.constant 0 : i32
    return %arg0, %arg1, %c0_i32 : i32, i32, i32
  }
  func.func @transform_1(%arg0: i32, %arg1: i32) -> (i32, i32) {
    %c0_i32 = arith.constant 0 : i32
    %c0_i32_0 = arith.constant 0 : i32
    %c0_i32_1 = arith.constant 0 : i32
    return %c0_i32, %c0_i32_0 : i32, i32
  }
  func.func @transform_2(%arg0: i32, %arg1: i32) -> (i32, i32) {
    %c0_i32 = arith.constant 0 : i32
    %c0_i32_0 = arith.constant 0 : i32
    %c0_i32_1 = arith.constant 0 : i32
    return %c0_i32, %c0_i32_0 : i32, i32
  }
  func.func @transform_3(%arg0: i32, %arg1: i32) -> (i32, i32) {
    %c0_i32 = arith.constant 0 : i32
    %c0_i32_0 = arith.constant 0 : i32
    return %arg1, %c0_i32 : i32, i32
  }
  func.func @transform_4(%arg0: i32, %arg1: i32) -> (i32, i32, i32) {
    %c0_i32 = arith.constant 0 : i32
    %c0_i32_0 = arith.constant 0 : i32
    return %arg0, %arg1, %c0_i32 : i32, i32, i32
  }
}

</mosaic_0001>

<llo_original>
// kernel: tpu_custom_call.1
$region0: #{tpu_custom_call.1}
  #allocation0 [shape = 'u32[]', space=smem, size = 0x4, offset = 0x4, fixed_abs, tag = 'smem constant byte address 0x4 - core index']
  #allocation1 [shape = 'u32[144,128]{1,0:T(1,128)}', space=vmem, size = 0x12000, scoped, tag = 'internal scratch']
  %s0 = inlined_call_operand.vmem [shape: bf16[2,288,27], index: 0, kind: input, shape index: {}]
  %s1 = inlined_call_operand.vmem [shape: bf16[27,64], index: 1, kind: input, shape index: {}]
  %s2 = inlined_call_operand.vmem [shape: f32[1,64], index: 2, kind: input, shape index: {}]
  %s3 = inlined_call_operand.vmem [shape: f32[288,1], index: 3, kind: input, shape index: {}]
  %s4 = inlined_call_operand.vmem [shape: bf16[2,288,64], index: 4, kind: output, shape index: {}]
  %s5 = sld [smem:[#allocation0]]
  $region49: #{tpu_custom_call.1} parent=0
    _
  %s7 = ssub.s32 1, %s5
  %s8 = scalar_select 0, %s7, %s5
  loop: start=0, step=1, limit=4
  $region2: #{tpu_custom_call.1} parent=0 // loop_pre_header
    _
  $region3: #{tpu_custom_call.1} parent=0 // loop_header
    %s10 = sphi 0, %s14
    %p11 = scmp.ge.s32.totalorder %s10, 4
    %s17 = sphi 0, %s29
    %s18 = sphi 0, %s25
    %s19 = sphi 0, %s17
    %s20 = sphi 0, %s18
    %s21 = sphi 0, %s19
    %s22 = sphi 0, %s20
    %s34 = sphi 0, %s36
    %s37 = sphi 0, %s34
    %s38 = sphi 0, %s37
    %s54 = sphi 0, %s38
    %s58 = sphi 0, %s58
    %s60 = sphi 0, %s58
    %s61 = sphi 0, %s60
    %s75 = sphi 0, %s61
    %s79 = sphi 0, %s79
    %s81 = sphi 0, %s79
    %s82 = sphi 0, %s81
    %s96 = sphi 0, %s82
    %s102 = sphi 0, %s104
    %s105 = sphi 0, %s102
    %s106 = sphi 0, %s105
    %s122 = sphi 0, %s106
    %s130 = sphi 0, %s132
    %s133 = sphi 0, %s130
    %s134 = sphi 0, %s133
    %s150 = sphi 0, %s134
  $region4: #{tpu_custom_call.1} parent=0 // loop_header_branch
    %13 = sbr.rel (%p11) target = $region8
  $region5: #{tpu_custom_call.1} parent=0 // loop_body
    %s15 = ssub.s32 %s10, 1
    %s16 = ssub.s32 %s10, 2
    %s23 = sadd.s32 1, %s18
    %p24 = scmp.ge.s32.totalorder %s23, 1
    %s25 = scalar_select %p24, 0, %s23
    %s26 = sadd.s32 1, %s17
    %s27 = scalar_select %p24, %s26, %s17
    %p28 = scmp.ge.s32.totalorder %s27, 2
    %s29 = scalar_select %p28, 0, %s27
    %s30 = ssub.s32 %s17, %s29
    %s31 = ssub.s32 %s18, %s25
    %s32 = sor.u32 %s30, %s31
    %p33 = scmp.eq.s32.totalorder %s32, 0
    %s35 = sadd.s32 %s34, 1
    %s36 = scalar_select %p33, %s34, %s35
    %p39 = pneg %p33
    %p40 = scmp.eq.s32.totalorder %s10, 1
    %p41 = por %p39, %p40
    %p42 = scmp.ne.s32.totalorder %s34, %s37
    %p43 = scmp.eq.s32.totalorder %s10, 0
    %p44 = por %p42, %p43
    %p45 = scmp.ne.s32.totalorder %s34, %s37
    %p46 = scmp.eq.s32.totalorder %s15, 1
    %p47 = por %p45, %p46
    %p48 = scmp.ne.s32.totalorder %s37, %s38
    %p49 = scmp.eq.s32.totalorder %s15, 0
    %p50 = por %p48, %p49
    %p51 = scmp.ne.s32.totalorder %s37, %s38
    %p52 = scmp.eq.s32.totalorder %s16, 1
    %p53 = por %p51, %p52
    %p55 = scmp.ne.s32.totalorder %s38, %s54
    %p56 = scmp.eq.s32.totalorder %s16, 0
    %p57 = por %p55, %p56
    %s59 = sadd.s32 %s58, 1
    %p62 = scmp.eq.s32.totalorder %s10, 1
    %p63 = scmp.ne.s32.totalorder %s58, %s60
    %p64 = scmp.eq.s32.totalorder %s10, 0
    %p65 = por %p63, %p64
    %p66 = scmp.ne.s32.totalorder %s58, %s60
    %p67 = scmp.eq.s32.totalorder %s15, 1
    %p68 = por %p66, %p67
    %p69 = scmp.ne.s32.totalorder %s60, %s61
    %p70 = scmp.eq.s32.totalorder %s15, 0
    %p71 = por %p69, %p70
    %p72 = scmp.ne.s32.totalorder %s60, %s61
    %p73 = scmp.eq.s32.totalorder %s16, 1
    %p74 = por %p72, %p73
    %p76 = scmp.ne.s32.totalorder %s61, %s75
    %p77 = scmp.eq.s32.totalorder %s16, 0
    %p78 = por %p76, %p77
    %s80 = sadd.s32 %s79, 1
    %p83 = scmp.eq.s32.totalorder %s10, 1
    %p84 = scmp.ne.s32.totalorder %s79, %s81
    %p85 = scmp.eq.s32.totalorder %s10, 0
    %p86 = por %p84, %p85
    %p87 = scmp.ne.s32.totalorder %s79, %s81
    %p88 = scmp.eq.s32.totalorder %s15, 1
    %p89 = por %p87, %p88
    %p90 = scmp.ne.s32.totalorder %s81, %s82
    %p91 = scmp.eq.s32.totalorder %s15, 0
    %p92 = por %p90, %p91
    %p93 = scmp.ne.s32.totalorder %s81, %s82
    %p94 = scmp.eq.s32.totalorder %s16, 1
    %p95 = por %p93, %p94
    %p97 = scmp.ne.s32.totalorder %s82, %s96
    %p98 = scmp.eq.s32.totalorder %s16, 0
    %p99 = por %p97, %p98
    %s100 = ssub.s32 %s18, %s25
    %p101 = scmp.eq.s32.totalorder %s100, 0
    %s103 = sadd.s32 %s102, 1
    %s104 = scalar_select %p101, %s102, %s103
    %p107 = pneg %p101
    %p108 = scmp.eq.s32.totalorder %s10, 1
    %p109 = por %p107, %p108
    %p110 = scmp.ne.s32.totalorder %s102, %s105
    %p111 = scmp.eq.s32.totalorder %s10, 0
    %p112 = por %p110, %p111
    %p113 = scmp.ne.s32.totalorder %s102, %s105
    %p114 = scmp.eq.s32.totalorder %s15, 1
    %p115 = por %p113, %p114
    %p116 = scmp.ne.s32.totalorder %s105, %s106
    %p117 = scmp.eq.s32.totalorder %s15, 0
    %p118 = por %p116, %p117
    %p119 = scmp.ne.s32.totalorder %s105, %s106
    %p120 = scmp.eq.s32.totalorder %s16, 1
    %p121 = por %p119, %p120
    %p123 = scmp.ne.s32.totalorder %s106, %s122
    %p124 = scmp.eq.s32.totalorder %s16, 0
    %p125 = por %p123, %p124
    %s126 = ssub.s32 %s17, %s29
    %s127 = ssub.s32 %s18, %s25
    %s128 = sor.u32 %s126, %s127
    %p129 = scmp.eq.s32.totalorder %s128, 0
    %s131 = sadd.s32 %s130, 1
    %s132 = scalar_select %p129, %s130, %s131
    %p135 = pneg %p129
    %p136 = scmp.eq.s32.totalorder %s10, 1
    %p137 = por %p135, %p136
    %p138 = scmp.ne.s32.totalorder %s130, %s133
    %p139 = scmp.eq.s32.totalorder %s10, 0
    %p140 = por %p138, %p139
    %p141 = scmp.ne.s32.totalorder %s130, %s133
    %p142 = scmp.eq.s32.totalorder %s15, 1
    %p143 = por %p141, %p142
    %p144 = scmp.ne.s32.totalorder %s133, %s134
    %p145 = scmp.eq.s32.totalorder %s15, 0
    %p146 = por %p144, %p145
    %p147 = scmp.ne.s32.totalorder %s133, %s134
    %p148 = scmp.eq.s32.totalorder %s16, 1
    %p149 = por %p147, %p148
    %p151 = scmp.ne.s32.totalorder %s134, %s150
    %p152 = scmp.eq.s32.totalorder %s16, 0
    %p153 = por %p151, %p152
    %p154 = scmp.le.s32.totalorder 1, %s10
    %p155 = scmp.lt.s32.totalorder %s10, 3
    %p156 = pnand %p154, %p155
    %p157 = pneg %p156
    // Predicated region
    $region9: #{tpu_custom_call.1} parent=5 // pred_check
      _
    $region10: #{tpu_custom_call.1} parent=5 // pred_check_branch
      %159 = sbr.rel (%p156) target = $region12
    $region11: #{tpu_custom_call.1} parent=5 // pred_region
      %s160 = ssub.s32 %s10, 1
      // Predicated region
      $region13: #{tpu_custom_call.1} parent=11 // pred_check
        %p161 = pneg %p71
      $region14: #{tpu_custom_call.1} parent=11 // pred_check_branch
        %163 = sbr.rel (%p161) target = $region16
      $region15: #{tpu_custom_call.1} parent=11 // pred_region
        _
      $region16: #{tpu_custom_call.1} parent=11 // pred_fallthru
        _
      // Predicated region
      $region17: #{tpu_custom_call.1} parent=11 // pred_check
        %p164 = pneg %p92
      $region18: #{tpu_custom_call.1} parent=11 // pred_check_branch
        %166 = sbr.rel (%p164) target = $region20
      $region19: #{tpu_custom_call.1} parent=11 // pred_region
        _
      $region20: #{tpu_custom_call.1} parent=11 // pred_fallthru
        _
      // Predicated region
      $region21: #{tpu_custom_call.1} parent=11 // pred_check
        %p167 = pneg %p118
      $region22: #{tpu_custom_call.1} parent=11 // pred_check_branch
        %169 = sbr.rel (%p167) target = $region24
      $region23: #{tpu_custom_call.1} parent=11 // pred_region
        %s170 = smul.u32 36, %s20
        %p171 = scmp.lt.s32.totalorder %s170, 35
        %s172 = scalar_select %p171, %s170, 35
        %s173 = smul.addr %s172, 8
        %s174 = scalar_lea.vmem %s3, %s173
        %s175 = smul.u32 36, %s20
      $region24: #{tpu_custom_call.1} parent=11 // pred_fallthru
        _
    $region12: #{tpu_custom_call.1} parent=5 // pred_fallthru
      _
    %p176 = scmp.lt.s32.totalorder %s10, 2
    // Predicated region
    $region25: #{tpu_custom_call.1} parent=5 // pred_check
      %p177 = pneg %p176
    $region26: #{tpu_custom_call.1} parent=5 // pred_check_branch
      %179 = sbr.rel (%p177) target = $region28
    $region27: #{tpu_custom_call.1} parent=5 // pred_region
      // Predicated region
      $region29: #{tpu_custom_call.1} parent=27 // pred_check
        %p180 = pneg %p44
      $region30: #{tpu_custom_call.1} parent=27 // pred_check_branch
        %182 = sbr.rel (%p180) target = $region32
      $region31: #{tpu_custom_call.1} parent=27 // pred_region
        %s183 = smul.u32 36, %s18
        %p184 = scmp.lt.s32.totalorder %s17, 1
        %s185 = scalar_select %p184, %s17, 1
        %p186 = scmp.lt.s32.totalorder %s183, 35
        %s187 = scalar_select %p186, %s183, 35
        %s188 = smul.addr %s185, 36
        %s189 = sadd.s32 %s187, %s188
        %s190 = smul.addr %s189, 4
        %s191 = scalar_lea.vmem %s0, %s190
        %s192 = smul.u32 36, %s18
      $region32: #{tpu_custom_call.1} parent=27 // pred_fallthru
        _
    $region28: #{tpu_custom_call.1} parent=5 // pred_fallthru
      _
    %p193 = scmp.le.s32.totalorder 1, %s10
    %p194 = scmp.lt.s32.totalorder %s10, 3
    %p195 = pnand %p193, %p194
    %p196 = pneg %p195
    // Predicated region
    $region33: #{tpu_custom_call.1} parent=5 // pred_check
      _
    $region34: #{tpu_custom_call.1} parent=5 // pred_check_branch
      %198 = sbr.rel (%p195) target = $region36
    $region35: #{tpu_custom_call.1} parent=5 // pred_region
      %s199 = ssub.s32 %s10, 1
      %s200 = smul.u32 36, %s20
      %p201 = scmp.lt.s32.totalorder %s19, 1
      %s202 = scalar_select %p201, %s19, 1
      %p203 = scmp.lt.s32.totalorder %s200, 35
      %s204 = scalar_select %p203, %s200, 35
      %s205 = smul.addr %s202, 36
      %s206 = sadd.s32 %s204, %s205
      %s207 = smul.addr %s206, 4
      %s208 = scalar_lea.vmem %s0, %s207
      %p209 = pneg %p50
      %p210 = pneg %p47
      %p211 = pneg %p71
      %p212 = pneg %p68
      %p213 = pneg %p92
      %p214 = pneg %p89
      %s215 = smul.u32 36, %s20
      %p216 = scmp.lt.s32.totalorder %s215, 35
      %s217 = scalar_select %p216, %s215, 35
      %s218 = smul.addr %s217, 8
      %s219 = scalar_lea.vmem %s3, %s218
      %p220 = pneg %p118
      %p221 = pneg %p115
      %p222 = pneg %p146
      %p223 = pneg %p143
      %s224 = smul.u32 36, %s20
      %p225 = scmp.lt.s32.totalorder %s19, 1
      %s226 = scalar_select %p225, %s19, 1
      %p227 = scmp.lt.s32.totalorder %s224, 35
      %s228 = scalar_select %p227, %s224, 35
      %s229 = smul.addr %s226, 36
      %s230 = sadd.s32 %s228, %s229
      %s231 = smul.addr %s230, 4
      %s232 = scalar_lea.vmem %s4, %s231
      %s233 = smul.u32 36, %s20
      %p234 = scmp.lt.s32.totalorder %s19, 1
      %s235 = scalar_select %p234, %s19, 1
      %p236 = scmp.lt.s32.totalorder %s233, 35
      %s237 = scalar_select %p236, %s233, 35
      %s238 = smul.addr %s235, 36
      %s239 = sadd.s32 %s237, %s238
      %s240 = smul.addr %s239, 4
      %s241 = scalar_lea.vmem %s0, %s240
      %s242 = smul.u32 36, %s20
      %s243 = smul.u32 36, %s20
      %p244 = scmp.lt.s32.totalorder %s243, 35
      %s245 = scalar_select %p244, %s243, 35
      %s246 = smul.addr %s245, 8
      %s247 = scalar_lea.vmem %s3, %s246
      %s248 = smul.u32 36, %s20
      %s249 = smul.u32 36, %s20
      %p250 = scmp.lt.s32.totalorder %s19, 1
      %s251 = scalar_select %p250, %s19, 1
      %p252 = scmp.lt.s32.totalorder %s249, 35
      %s253 = scalar_select %p252, %s249, 35
      %s254 = smul.addr %s251, 36
      %s255 = sadd.s32 %s253, %s254
      %s256 = smul.addr %s255, 4
      %s257 = scalar_lea.vmem %s4, %s256
      %s258 = smul.u32 36, %s20
      %v260 = vld [vmem:[%s241] sm:$0xf]
      %v261 = vld [vmem:[%s241 + $0x4] sm:$0xf]
      %v262 = vld [vmem:[%s241 + $0x8] sm:$0xf]
      %v263 = vld [vmem:[%s241 + $0xc] sm:$0xf]
      %v264 = vld [vmem:[%s241 + $0x10] sm:$0xf]
      %v265 = vld [vmem:[%s241 + $0x14] sm:$0xf]
      %v266 = vld [vmem:[%s241 + $0x18] sm:$0xf]
      %v267 = vld [vmem:[%s241 + $0x1c] sm:$0xf]
      %v268 = vld [vmem:[%s241 + $0x20] sm:$0xf]
      %v269 = vld [vmem:[%s241 + $0x24] sm:$0xf]
      %v270 = vld [vmem:[%s241 + $0x28] sm:$0xf]
      %v271 = vld [vmem:[%s241 + $0x2c] sm:$0xf]
      %v272 = vld [vmem:[%s241 + $0x30] sm:$0xf]
      %v273 = vld [vmem:[%s241 + $0x34] sm:$0xf]
      %v274 = vld [vmem:[%s241 + $0x38] sm:$0xf]
      %v275 = vld [vmem:[%s241 + $0x3c] sm:$0xf]
      %v276 = vld [vmem:[%s241 + $0x40] sm:$0xf]
      %v277 = vld [vmem:[%s241 + $0x44] sm:$0xf]
      %v278 = vld [vmem:[%s241 + $0x48] sm:$0xf]
      %v279 = vld [vmem:[%s241 + $0x4c] sm:$0xf]
      %v280 = vld [vmem:[%s241 + $0x50] sm:$0xf]
      %v281 = vld [vmem:[%s241 + $0x54] sm:$0xf]
      %v282 = vld [vmem:[%s241 + $0x58] sm:$0xf]
      %v283 = vld [vmem:[%s241 + $0x5c] sm:$0xf]
      %v284 = vld [vmem:[%s241 + $0x60] sm:$0xf]
      %v285 = vld [vmem:[%s241 + $0x64] sm:$0xf]
      %v286 = vld [vmem:[%s241 + $0x68] sm:$0xf]
      %v287 = vld [vmem:[%s241 + $0x6c] sm:$0xf]
      %v288 = vld [vmem:[%s241 + $0x70] sm:$0xf]
      %v289 = vld [vmem:[%s241 + $0x74] sm:$0xf]
      %v290 = vld [vmem:[%s241 + $0x78] sm:$0xf]
      %v291 = vld [vmem:[%s241 + $0x7c] sm:$0xf]
      %v292 = vld [vmem:[%s241 + $0x80] sm:$0xf]
      %v293 = vld [vmem:[%s241 + $0x84] sm:$0xf]
      %v294 = vld [vmem:[%s241 + $0x88] sm:$0xf]
      %v295 = vld [vmem:[%s241 + $0x8c] sm:$0xf]
      %v296 = vld [vmem:[%s1] sm:$0xf]
      %v297 = vld [vmem:[%s1 + $0x4] sm:$0xf]
      %v298 = vld [vmem:[%s1 + $0x8] sm:$0xf]
      %v299 = vld [vmem:[%s1 + $0xc] sm:$0x3]
      %v300 = vld [vmem:[%s2] sm:$0x1]
      %v302 = vlaneseq
      %v303 = vshrl.u32 %v302, 7
      %v304 = vsub.s32 0, %v303
      %v305 = vrot.slane %v300, %v304
      %v343 = vunpack.c.l.b16 %v260
      %v344 = vunpack.c.l.b16 %v261
      %v345 = vunpack.c.l.b16 %v262
      %v346 = vunpack.c.l.b16 %v263
      %v347 = vunpack.c.l.b16 %v264
      %v348 = vunpack.c.l.b16 %v265
      %v349 = vunpack.c.l.b16 %v266
      %v350 = vunpack.c.l.b16 %v267
      %v351 = vunpack.c.l.b16 %v268
      %v352 = vunpack.c.l.b16 %v269
      %v353 = vunpack.c.l.b16 %v270
      %v354 = vunpack.c.l.b16 %v271
      %v355 = vunpack.c.l.b16 %v272
      %v356 = vunpack.c.l.b16 %v273
      %v357 = vunpack.c.l.b16 %v274
      %v358 = vunpack.c.l.b16 %v275
      %v359 = vunpack.c.l.b16 %v276
      %v360 = vunpack.c.l.b16 %v277
      %v361 = vunpack.c.l.b16 %v278
      %v362 = vunpack.c.l.b16 %v279
      %v363 = vunpack.c.l.b16 %v280
      %v364 = vunpack.c.l.b16 %v281
      %v365 = vunpack.c.l.b16 %v282
      %v366 = vunpack.c.l.b16 %v283
      %v367 = vunpack.c.l.b16 %v284
      %v368 = vunpack.c.l.b16 %v285
      %v369 = vunpack.c.l.b16 %v286
      %v370 = vunpack.c.l.b16 %v287
      %v371 = vunpack.c.l.b16 %v288
      %v372 = vunpack.c.l.b16 %v289
      %v373 = vunpack.c.l.b16 %v290
      %v374 = vunpack.c.l.b16 %v291
      %v375 = vunpack.c.l.b16 %v292
      %v376 = vunpack.c.l.b16 %v293
      %v377 = vunpack.c.l.b16 %v294
      %v378 = vunpack.c.l.b16 %v295
      %v379 = vpack.c.b16 %v344, %v343
      %v380 = vpack.c.b16 %v346, %v345
      %v381 = vpack.c.b16 %v348, %v347
      %v382 = vpack.c.b16 %v350, %v349
      %v383 = vpack.c.b16 %v352, %v351
      %v384 = vpack.c.b16 %v354, %v353
      %v385 = vpack.c.b16 %v356, %v355
      %v386 = vpack.c.b16 %v358, %v357
      %v387 = vpack.c.b16 %v360, %v359
      %v388 = vpack.c.b16 %v362, %v361
      %v389 = vpack.c.b16 %v364, %v363
      %v390 = vpack.c.b16 %v366, %v365
      %v391 = vpack.c.b16 %v368, %v367
      %v392 = vpack.c.b16 %v370, %v369
      %v393 = vpack.c.b16 %v372, %v371
      %v394 = vpack.c.b16 %v374, %v373
      %v395 = vpack.c.b16 %v376, %v375
      %v396 = vpack.c.b16 %v378, %v377
      %v401 = vunpack.c.l.b16 %v296
      %v402 = vunpack.c.l.b16 %v297
      %v403 = vunpack.c.l.b16 %v298
      %v404 = vunpack.c.l.b16 %v299
      %v405 = vpack.c.b16 %v402, %v401
      %v406 = vpack.c.b16 %v404, %v403
      %vm408 = vcmask 220160
      %v410 = vsel %vm408, %v379, 0
      %v413 = vsel %vm408, %v380, 0
      %v416 = vsel %vm408, %v381, 0
      %v419 = vsel %vm408, %v382, 0
      %v422 = vsel %vm408, %v383, 0
      %v425 = vsel %vm408, %v384, 0
      %v428 = vsel %vm408, %v385, 0
      %v431 = vsel %vm408, %v386, 0
      %v434 = vsel %vm408, %v387, 0
      %v437 = vsel %vm408, %v388, 0
      %v440 = vsel %vm408, %v389, 0
      %v443 = vsel %vm408, %v390, 0
      %v446 = vsel %vm408, %v391, 0
      %v449 = vsel %vm408, %v392, 0
      %v452 = vsel %vm408, %v393, 0
      %v455 = vsel %vm408, %v394, 0
      %v458 = vsel %vm408, %v395, 0
      %v461 = vsel %vm408, %v396, 0
      %vm463 = vcmask 1044480
      %vm464 = vcmask 1045504
      %v465 = vsel %vm463, 4294967295, 65535
      %v466 = vsel %vm464, %v465, 0
      %v468 = vand.u32 %v406, %v466
      %470 = vmatprep.subr.bf16.mxu0 0
      %471 = vmatpush1.bf16.msra.mxu0 %v405
      %472 = vmatprep.subr.bf16.mxu0 0
      %473 = vmatpush1.bf16.msra.mxu0 %v468
      %474 = vmatprep.subr.bf16.mxu0 0
      %475 = vmatpush1.bf16.msra.mxu0 0
      %476 = vmatprep.subr.bf16.mxu0 0
      %477 = vmatpush1.bf16.msra.mxu0 0
      %478 = vmatprep.subr.bf16.mxu0 0
      %479 = vmatpush1.bf16.msra.mxu0 0
      %480 = vmatprep.subr.bf16.mxu0 0
      %481 = vmatpush1.bf16.msra.mxu0 0
      %482 = vmatprep.subr.bf16.mxu0 0
      %483 = vmatpush1.bf16.msra.mxu0 0
      %484 = vmatprep.subr.bf16.mxu0 0
      %485 = vmatpush1.bf16.msra.mxu0 0
      %486 = vmatprep.subr.bf16.mxu0 0
      %487 = vmatpush1.bf16.msra.mxu0 0
      %488 = vmatprep.subr.bf16.mxu0 0
      %489 = vmatpush1.bf16.msra.mxu0 0
      %490 = vmatprep.subr.bf16.mxu0 0
      %491 = vmatpush1.bf16.msra.mxu0 0
      %492 = vmatprep.subr.bf16.mxu0 0
      %493 = vmatpush1.bf16.msra.mxu0 0
      %494 = vmatprep.subr.bf16.mxu0 0
      %495 = vmatpush1.bf16.msra.mxu0 0
      %496 = vmatprep.subr.bf16.mxu0 0
      %497 = vmatpush1.bf16.msra.mxu0 0
      %498 = vmatprep.subr.bf16.mxu0 0
      %499 = vmatpush1.bf16.msra.mxu0 0
      %500 = vmatprep.subr.bf16.mxu0 0
      %501 = vmatpush1.bf16.msra.mxu0 0
      %502 = vmatprep.mubr.bf16.mxu0 0
      %503 = vmatmul.mubr.bf16.gmra.mrb[0].mxu0 %v410
      %v504 = vpop.f32.mrb[0].mxu0
      %v505 = vadd.f32 %v305, %v504
      %v506 = vpop.f32.mrb[0].mxu0
      %v507 = vpop.f32.mrb[0].mxu0
      %v508 = vadd.f32 %v305, %v507
      %v509 = vpop.f32.mrb[0].mxu0
      %510 = vmatprep.mubr.bf16.mxu0 0
      %511 = vmatmul.mubr.bf16.gmra.mrb[0].mxu0 %v413
      %v512 = vpop.f32.mrb[0].mxu0
      %v513 = vadd.f32 %v305, %v512
      %v514 = vpop.f32.mrb[0].mxu0
      %v515 = vpop.f32.mrb[0].mxu0
      %v516 = vadd.f32 %v305, %v515
      %v517 = vpop.f32.mrb[0].mxu0
      %518 = vmatprep.mubr.bf16.mxu0 0
      %519 = vmatmul.mubr.bf16.gmra.mrb[0].mxu0 %v416
      %v520 = vpop.f32.mrb[0].mxu0
      %v521 = vadd.f32 %v305, %v520
      %v522 = vpop.f32.mrb[0].mxu0
      %v523 = vpop.f32.mrb[0].mxu0
      %v524 = vadd.f32 %v305, %v523
      %v525 = vpop.f32.mrb[0].mxu0
      %526 = vmatprep.mubr.bf16.mxu0 0
      %527 = vmatmul.mubr.bf16.gmra.mrb[0].mxu0 %v419
      %v528 = vpop.f32.mrb[0].mxu0
      %v529 = vadd.f32 %v305, %v528
      %v530 = vpop.f32.mrb[0].mxu0
      %v531 = vpop.f32.mrb[0].mxu0
      %v532 = vadd.f32 %v305, %v531
      %v533 = vpop.f32.mrb[0].mxu0
      %534 = vmatprep.mubr.bf16.mxu0 0
      %535 = vmatmul.mubr.bf16.gmra.mrb[0].mxu0 %v422
      %v536 = vpop.f32.mrb[0].mxu0
      %v537 = vadd.f32 %v305, %v536
      %v538 = vpop.f32.mrb[0].mxu0
      %v539 = vpop.f32.mrb[0].mxu0
      %v540 = vadd.f32 %v305, %v539
      %v541 = vpop.f32.mrb[0].mxu0
      %542 = vmatprep.mubr.bf16.mxu0 0
      %543 = vmatmul.mubr.bf16.gmra.mrb[0].mxu0 %v425
      %v544 = vpop.f32.mrb[0].mxu0
      %v545 = vadd.f32 %v305, %v544
      %v546 = vpop.f32.mrb[0].mxu0
      %v547 = vpop.f32.mrb[0].mxu0
      %v548 = vadd.f32 %v305, %v547
      %v549 = vpop.f32.mrb[0].mxu0
      %550 = vmatprep.mubr.bf16.mxu0 0
      %551 = vmatmul.mubr.bf16.gmra.mrb[0].mxu0 %v428
      %v552 = vpop.f32.mrb[0].mxu0
      %v553 = vadd.f32 %v305, %v552
      %v554 = vpop.f32.mrb[0].mxu0
      %v555 = vpop.f32.mrb[0].mxu0
      %v556 = vadd.f32 %v305, %v555
      %v557 = vpop.f32.mrb[0].mxu0
      %558 = vmatprep.mubr.bf16.mxu0 0
      %559 = vmatmul.mubr.bf16.gmra.mrb[0].mxu0 %v431
      %v560 = vpop.f32.mrb[0].mxu0
      %v561 = vadd.f32 %v305, %v560
      %v562 = vpop.f32.mrb[0].mxu0
      %v563 = vpop.f32.mrb[0].mxu0
      %v564 = vadd.f32 %v305, %v563
      %v565 = vpop.f32.mrb[0].mxu0
      %566 = vmatprep.mubr.bf16.mxu0 0
      %567 = vmatmul.mubr.bf16.gmra.mrb[0].mxu0 %v434
      %v568 = vpop.f32.mrb[0].mxu0
      %v569 = vadd.f32 %v305, %v568
      %v570 = vpop.f32.mrb[0].mxu0
      %v571 = vpop.f32.mrb[0].mxu0
      %v572 = vadd.f32 %v305, %v571
      %v573 = vpop.f32.mrb[0].mxu0
      %574 = vmatprep.mubr.bf16.mxu0 0
      %575 = vmatmul.mubr.bf16.gmra.mrb[0].mxu0 %v437
      %v576 = vpop.f32.mrb[0].mxu0
      %v577 = vadd.f32 %v305, %v576
      %v578 = vpop.f32.mrb[0].mxu0
      %v579 = vpop.f32.mrb[0].mxu0
      %v580 = vadd.f32 %v305, %v579
      %v581 = vpop.f32.mrb[0].mxu0
      %582 = vmatprep.mubr.bf16.mxu0 0
      %583 = vmatmul.mubr.bf16.gmra.mrb[0].mxu0 %v440
      %v584 = vpop.f32.mrb[0].mxu0
      %v585 = vadd.f32 %v305, %v584
      %v586 = vpop.f32.mrb[0].mxu0
      %v587 = vpop.f32.mrb[0].mxu0
      %v588 = vadd.f32 %v305, %v587
      %v589 = vpop.f32.mrb[0].mxu0
      %590 = vmatprep.mubr.bf16.mxu0 0
      %591 = vmatmul.mubr.bf16.gmra.mrb[0].mxu0 %v443
      %v592 = vpop.f32.mrb[0].mxu0
      %v593 = vadd.f32 %v305, %v592
      %v594 = vpop.f32.mrb[0].mxu0
      %v595 = vpop.f32.mrb[0].mxu0
      %v596 = vadd.f32 %v305, %v595
      %v597 = vpop.f32.mrb[0].mxu0
      %598 = vmatprep.mubr.bf16.mxu0 0
      %599 = vmatmul.mubr.bf16.gmra.mrb[0].mxu0 %v446
      %v600 = vpop.f32.mrb[0].mxu0
      %v601 = vadd.f32 %v305, %v600
      %v602 = vpop.f32.mrb[0].mxu0
      %v603 = vpop.f32.mrb[0].mxu0
      %v604 = vadd.f32 %v305, %v603
      %v605 = vpop.f32.mrb[0].mxu0
      %606 = vmatprep.mubr.bf16.mxu0 0
      %607 = vmatmul.mubr.bf16.gmra.mrb[0].mxu0 %v449
      %v608 = vpop.f32.mrb[0].mxu0
      %v609 = vadd.f32 %v305, %v608
      %v610 = vpop.f32.mrb[0].mxu0
      %v611 = vpop.f32.mrb[0].mxu0
      %v612 = vadd.f32 %v305, %v611
      %v613 = vpop.f32.mrb[0].mxu0
      %614 = vmatprep.mubr.bf16.mxu0 0
      %615 = vmatmul.mubr.bf16.gmra.mrb[0].mxu0 %v452
      %v616 = vpop.f32.mrb[0].mxu0
      %v617 = vadd.f32 %v305, %v616
      %v618 = vpop.f32.mrb[0].mxu0
      %v619 = vpop.f32.mrb[0].mxu0
      %v620 = vadd.f32 %v305, %v619
      %v621 = vpop.f32.mrb[0].mxu0
      %622 = vmatprep.mubr.bf16.mxu0 0
      %623 = vmatmul.mubr.bf16.gmra.mrb[0].mxu0 %v455
      %v624 = vpop.f32.mrb[0].mxu0
      %v625 = vadd.f32 %v305, %v624
      %v626 = vpop.f32.mrb[0].mxu0
      %v627 = vpop.f32.mrb[0].mxu0
      %v628 = vadd.f32 %v305, %v627
      %v629 = vpop.f32.mrb[0].mxu0
      %630 = vmatprep.mubr.bf16.mxu0 0
      %631 = vmatmul.mubr.bf16.gmra.mrb[0].mxu0 %v458
      %v632 = vpop.f32.mrb[0].mxu0
      %v633 = vadd.f32 %v305, %v632
      %v634 = vpop.f32.mrb[0].mxu0
      %v635 = vpop.f32.mrb[0].mxu0
      %v636 = vadd.f32 %v305, %v635
      %v637 = vpop.f32.mrb[0].mxu0
      %638 = vmatprep.mubr.bf16.mxu0 0
      %639 = vmatmul.mubr.bf16.gmra.mrb[0].mxu0 %v461
      %v640 = vpop.f32.mrb[0].mxu0
      %v641 = vadd.f32 %v305, %v640
      %v642 = vpop.f32.mrb[0].mxu0
      %v643 = vpop.f32.mrb[0].mxu0
      %v644 = vadd.f32 %v305, %v643
      %v645 = vpop.f32.mrb[0].mxu0
      %646 = vdwg.mxu0
      %v647 = vmax.f32 %v505, 0.0
      %v648 = vmax.f32 %v508, 0.0
      %v649 = vmax.f32 %v513, 0.0
      %v650 = vmax.f32 %v516, 0.0
      %v651 = vmax.f32 %v521, 0.0
      %v652 = vmax.f32 %v524, 0.0
      %v653 = vmax.f32 %v529, 0.0
      %v654 = vmax.f32 %v532, 0.0
      %v655 = vmax.f32 %v537, 0.0
      %v656 = vmax.f32 %v540, 0.0
      %v657 = vmax.f32 %v545, 0.0
      %v658 = vmax.f32 %v548, 0.0
      %v659 = vmax.f32 %v553, 0.0
      %v660 = vmax.f32 %v556, 0.0
      %v661 = vmax.f32 %v561, 0.0
      %v662 = vmax.f32 %v564, 0.0
      %v663 = vmax.f32 %v569, 0.0
      %v664 = vmax.f32 %v572, 0.0
      %v665 = vmax.f32 %v577, 0.0
      %v666 = vmax.f32 %v580, 0.0
      %v667 = vmax.f32 %v585, 0.0
      %v668 = vmax.f32 %v588, 0.0
      %v669 = vmax.f32 %v593, 0.0
      %v670 = vmax.f32 %v596, 0.0
      %v671 = vmax.f32 %v601, 0.0
      %v672 = vmax.f32 %v604, 0.0
      %v673 = vmax.f32 %v609, 0.0
      %v674 = vmax.f32 %v612, 0.0
      %v675 = vmax.f32 %v617, 0.0
      %v676 = vmax.f32 %v620, 0.0
      %v677 = vmax.f32 %v625, 0.0
      %v678 = vmax.f32 %v628, 0.0
      %v679 = vmax.f32 %v633, 0.0
      %v680 = vmax.f32 %v636, 0.0
      %v681 = vmax.f32 %v641, 0.0
      %v682 = vmax.f32 %v644, 0.0
      %v683 = vld [vmem:[%s247] sm:$0xff]
      %v684 = vld [vmem:[%s247 + $0x8] sm:$0xff]
      %v685 = vld [vmem:[%s247 + $0x10] sm:$0xff]
      %v686 = vld [vmem:[%s247 + $0x18] sm:$0xff]
      %v687 = vld [vmem:[%s247 + $0x20] sm:$0xff]
      %v688 = vld [vmem:[%s247 + $0x28] sm:$0xff]
      %v689 = vld [vmem:[%s247 + $0x30] sm:$0xff]
      %v690 = vld [vmem:[%s247 + $0x38] sm:$0xff]
      %v691 = vld [vmem:[%s247 + $0x40] sm:$0xff]
      %v692 = vld [vmem:[%s247 + $0x48] sm:$0xff]
      %v693 = vld [vmem:[%s247 + $0x50] sm:$0xff]
      %v694 = vld [vmem:[%s247 + $0x58] sm:$0xff]
      %v695 = vld [vmem:[%s247 + $0x60] sm:$0xff]
      %v696 = vld [vmem:[%s247 + $0x68] sm:$0xff]
      %v697 = vld [vmem:[%s247 + $0x70] sm:$0xff]
      %v698 = vld [vmem:[%s247 + $0x78] sm:$0xff]
      %v699 = vld [vmem:[%s247 + $0x80] sm:$0xff]
      %v700 = vld [vmem:[%s247 + $0x88] sm:$0xff]
      %v701 = vld [vmem:[%s247 + $0x90] sm:$0xff]
      %v702 = vld [vmem:[%s247 + $0x98] sm:$0xff]
      %v703 = vld [vmem:[%s247 + $0xa0] sm:$0xff]
      %v704 = vld [vmem:[%s247 + $0xa8] sm:$0xff]
      %v705 = vld [vmem:[%s247 + $0xb0] sm:$0xff]
      %v706 = vld [vmem:[%s247 + $0xb8] sm:$0xff]
      %v707 = vld [vmem:[%s247 + $0xc0] sm:$0xff]
      %v708 = vld [vmem:[%s247 + $0xc8] sm:$0xff]
      %v709 = vld [vmem:[%s247 + $0xd0] sm:$0xff]
      %v710 = vld [vmem:[%s247 + $0xd8] sm:$0xff]
      %v711 = vld [vmem:[%s247 + $0xe0] sm:$0xff]
      %v712 = vld [vmem:[%s247 + $0xe8] sm:$0xff]
      %v713 = vld [vmem:[%s247 + $0xf0] sm:$0xff]
      %v714 = vld [vmem:[%s247 + $0xf8] sm:$0xff]
      %v715 = vld [vmem:[%s247 + $0x100] sm:$0xff]
      %v716 = vld [vmem:[%s247 + $0x108] sm:$0xff]
      %v717 = vld [vmem:[%s247 + $0x110] sm:$0xff]
      %v718 = vld [vmem:[%s247 + $0x118] sm:$0xff]
      %720 = vset.pattern.permute.xlu0 0
      %721 = vperm.xlu0 %720, %v683
      %v722 = vpop.permute.xlu0 %721
      %725 = vset.pattern.permute.xlu0 0
      %726 = vperm.xlu0 %725, %v684
      %v727 = vpop.permute.xlu0 %726
      %730 = vset.pattern.permute.xlu0 0
      %731 = vperm.xlu0 %730, %v685
      %v732 = vpop.permute.xlu0 %731
      %735 = vset.pattern.permute.xlu0 0
      %736 = vperm.xlu0 %735, %v686
      %v737 = vpop.permute.xlu0 %736
      %740 = vset.pattern.permute.xlu0 0
      %741 = vperm.xlu0 %740, %v687
      %v742 = vpop.permute.xlu0 %741
      %745 = vset.pattern.permute.xlu0 0
      %746 = vperm.xlu0 %745, %v688
      %v747 = vpop.permute.xlu0 %746
      %750 = vset.pattern.permute.xlu0 0
      %751 = vperm.xlu0 %750, %v689
      %v752 = vpop.permute.xlu0 %751
      %755 = vset.pattern.permute.xlu0 0
      %756 = vperm.xlu0 %755, %v690
      %v757 = vpop.permute.xlu0 %756
      %760 = vset.pattern.permute.xlu0 0
      %761 = vperm.xlu0 %760, %v691
      %v762 = vpop.permute.xlu0 %761
      %765 = vset.pattern.permute.xlu0 0
      %766 = vperm.xlu0 %765, %v692
      %v767 = vpop.permute.xlu0 %766
      %770 = vset.pattern.permute.xlu0 0
      %771 = vperm.xlu0 %770, %v693
      %v772 = vpop.permute.xlu0 %771
      %775 = vset.pattern.permute.xlu0 0
      %776 = vperm.xlu0 %775, %v694
      %v777 = vpop.permute.xlu0 %776
      %780 = vset.pattern.permute.xlu0 0
      %781 = vperm.xlu0 %780, %v695
      %v782 = vpop.permute.xlu0 %781
      %785 = vset.pattern.permute.xlu0 0
      %786 = vperm.xlu0 %785, %v696
      %v787 = vpop.permute.xlu0 %786
      %790 = vset.pattern.permute.xlu0 0
      %791 = vperm.xlu0 %790, %v697
      %v792 = vpop.permute.xlu0 %791
      %795 = vset.pattern.permute.xlu0 0
      %796 = vperm.xlu0 %795, %v698
      %v797 = vpop.permute.xlu0 %796
      %800 = vset.pattern.permute.xlu0 0
      %801 = vperm.xlu0 %800, %v699
      %v802 = vpop.permute.xlu0 %801
      %805 = vset.pattern.permute.xlu0 0
      %806 = vperm.xlu0 %805, %v700
      %v807 = vpop.permute.xlu0 %806
      %810 = vset.pattern.permute.xlu0 0
      %811 = vperm.xlu0 %810, %v701
      %v812 = vpop.permute.xlu0 %811
      %815 = vset.pattern.permute.xlu0 0
      %816 = vperm.xlu0 %815, %v702
      %v817 = vpop.permute.xlu0 %816
      %820 = vset.pattern.permute.xlu0 0
      %821 = vperm.xlu0 %820, %v703
      %v822 = vpop.permute.xlu0 %821
      %825 = vset.pattern.permute.xlu0 0
      %826 = vperm.xlu0 %825, %v704
      %v827 = vpop.permute.xlu0 %826
      %830 = vset.pattern.permute.xlu0 0
      %831 = vperm.xlu0 %830, %v705
      %v832 = vpop.permute.xlu0 %831
      %835 = vset.pattern.permute.xlu0 0
      %836 = vperm.xlu0 %835, %v706
      %v837 = vpop.permute.xlu0 %836
      %840 = vset.pattern.permute.xlu0 0
      %841 = vperm.xlu0 %840, %v707
      %v842 = vpop.permute.xlu0 %841
      %845 = vset.pattern.permute.xlu0 0
      %846 = vperm.xlu0 %845, %v708
      %v847 = vpop.permute.xlu0 %846
      %850 = vset.pattern.permute.xlu0 0
      %851 = vperm.xlu0 %850, %v709
      %v852 = vpop.permute.xlu0 %851
      %855 = vset.pattern.permute.xlu0 0
      %856 = vperm.xlu0 %855, %v710
      %v857 = vpop.permute.xlu0 %856
      %860 = vset.pattern.permute.xlu0 0
      %861 = vperm.xlu0 %860, %v711
      %v862 = vpop.permute.xlu0 %861
      %865 = vset.pattern.permute.xlu0 0
      %866 = vperm.xlu0 %865, %v712
      %v867 = vpop.permute.xlu0 %866
      %870 = vset.pattern.permute.xlu0 0
      %871 = vperm.xlu0 %870, %v713
      %v872 = vpop.permute.xlu0 %871
      %875 = vset.pattern.permute.xlu0 0
      %876 = vperm.xlu0 %875, %v714
      %v877 = vpop.permute.xlu0 %876
      %880 = vset.pattern.permute.xlu0 0
      %881 = vperm.xlu0 %880, %v715
      %v882 = vpop.permute.xlu0 %881
      %885 = vset.pattern.permute.xlu0 0
      %886 = vperm.xlu0 %885, %v716
      %v887 = vpop.permute.xlu0 %886
      %890 = vset.pattern.permute.xlu0 0
      %891 = vperm.xlu0 %890, %v717
      %v892 = vpop.permute.xlu0 %891
      %895 = vset.pattern.permute.xlu0 0
      %896 = vperm.xlu0 %895, %v718
      %v897 = vpop.permute.xlu0 %896
      %v899 = vmul.f32 %v647, %v722
      %v900 = vmul.f32 %v648, %v727
      %v901 = vmul.f32 %v649, %v732
      %v902 = vmul.f32 %v650, %v737
      %v903 = vmul.f32 %v651, %v742
      %v904 = vmul.f32 %v652, %v747
      %v905 = vmul.f32 %v653, %v752
      %v906 = vmul.f32 %v654, %v757
      %v907 = vmul.f32 %v655, %v762
      %v908 = vmul.f32 %v656, %v767
      %v909 = vmul.f32 %v657, %v772
      %v910 = vmul.f32 %v658, %v777
      %v911 = vmul.f32 %v659, %v782
      %v912 = vmul.f32 %v660, %v787
      %v913 = vmul.f32 %v661, %v792
      %v914 = vmul.f32 %v662, %v797
      %v915 = vmul.f32 %v663, %v802
      %v916 = vmul.f32 %v664, %v807
      %v917 = vmul.f32 %v665, %v812
      %v918 = vmul.f32 %v666, %v817
      %v919 = vmul.f32 %v667, %v822
      %v920 = vmul.f32 %v668, %v827
      %v921 = vmul.f32 %v669, %v832
      %v922 = vmul.f32 %v670, %v837
      %v923 = vmul.f32 %v671, %v842
      %v924 = vmul.f32 %v672, %v847
      %v925 = vmul.f32 %v673, %v852
      %v926 = vmul.f32 %v674, %v857
      %v927 = vmul.f32 %v675, %v862
      %v928 = vmul.f32 %v676, %v867
      %v929 = vmul.f32 %v677, %v872
      %v930 = vmul.f32 %v678, %v877
      %v931 = vmul.f32 %v679, %v882
      %v932 = vmul.f32 %v680, %v887
      %v933 = vmul.f32 %v681, %v892
      %v934 = vmul.f32 %v682, %v897
      %v935 = vpack.c.bf16 %v900, %v899
      %v936 = vpack.c.bf16 %v902, %v901
      %v937 = vpack.c.bf16 %v904, %v903
      %v938 = vpack.c.bf16 %v906, %v905
      %v939 = vpack.c.bf16 %v908, %v907
      %v940 = vpack.c.bf16 %v910, %v909
      %v941 = vpack.c.bf16 %v912, %v911
      %v942 = vpack.c.bf16 %v914, %v913
      %v943 = vpack.c.bf16 %v916, %v915
      %v944 = vpack.c.bf16 %v918, %v917
      %v945 = vpack.c.bf16 %v920, %v919
      %v946 = vpack.c.bf16 %v922, %v921
      %v947 = vpack.c.bf16 %v924, %v923
      %v948 = vpack.c.bf16 %v926, %v925
      %v949 = vpack.c.bf16 %v928, %v927
      %v950 = vpack.c.bf16 %v930, %v929
      %v951 = vpack.c.bf16 %v932, %v931
      %v952 = vpack.c.bf16 %v934, %v933
      %v971 = vunpack.c.l.b16 %v935
      %v972 = vunpack.c.h.b16 %v935
      %v973 = vunpack.c.l.b16 %v936
      %v974 = vunpack.c.h.b16 %v936
      %v975 = vunpack.c.l.b16 %v937
      %v976 = vunpack.c.h.b16 %v937
      %v977 = vunpack.c.l.b16 %v938
      %v978 = vunpack.c.h.b16 %v938
      %v979 = vunpack.c.l.b16 %v939
      %v980 = vunpack.c.h.b16 %v939
      %v981 = vunpack.c.l.b16 %v940
      %v982 = vunpack.c.h.b16 %v940
      %v983 = vunpack.c.l.b16 %v941
      %v984 = vunpack.c.h.b16 %v941
      %v985 = vunpack.c.l.b16 %v942
      %v986 = vunpack.c.h.b16 %v942
      %v987 = vunpack.c.l.b16 %v943
      %v988 = vunpack.c.h.b16 %v943
      %v989 = vunpack.c.l.b16 %v944
      %v990 = vunpack.c.h.b16 %v944
      %v991 = vunpack.c.l.b16 %v945
      %v992 = vunpack.c.h.b16 %v945
      %v993 = vunpack.c.l.b16 %v946
      %v994 = vunpack.c.h.b16 %v946
      %v995 = vunpack.c.l.b16 %v947
      %v996 = vunpack.c.h.b16 %v947
      %v997 = vunpack.c.l.b16 %v948
      %v998 = vunpack.c.h.b16 %v948
      %v999 = vunpack.c.l.b16 %v949
      %v1000 = vunpack.c.h.b16 %v949
      %v1001 = vunpack.c.l.b16 %v950
      %v1002 = vunpack.c.h.b16 %v950
      %v1003 = vunpack.c.l.b16 %v951
      %v1004 = vunpack.c.h.b16 %v951
      %v1005 = vunpack.c.l.b16 %v952
      %v1006 = vunpack.c.h.b16 %v952
      %v1007 = vpack.c.b16 %v971, %v971
      %v1008 = vpack.c.b16 %v972, %v972
      %v1009 = vpack.c.b16 %v973, %v973
      %v1010 = vpack.c.b16 %v974, %v974
      %v1011 = vpack.c.b16 %v975, %v975
      %v1012 = vpack.c.b16 %v976, %v976
      %v1013 = vpack.c.b16 %v977, %v977
      %v1014 = vpack.c.b16 %v978, %v978
      %v1015 = vpack.c.b16 %v979, %v979
      %v1016 = vpack.c.b16 %v980, %v980
      %v1017 = vpack.c.b16 %v981, %v981
      %v1018 = vpack.c.b16 %v982, %v982
      %v1019 = vpack.c.b16 %v983, %v983
      %v1020 = vpack.c.b16 %v984, %v984
      %v1021 = vpack.c.b16 %v985, %v985
      %v1022 = vpack.c.b16 %v986, %v986
      %v1023 = vpack.c.b16 %v987, %v987
      %v1024 = vpack.c.b16 %v988, %v988
      %v1025 = vpack.c.b16 %v989, %v989
      %v1026 = vpack.c.b16 %v990, %v990
      %v1027 = vpack.c.b16 %v991, %v991
      %v1028 = vpack.c.b16 %v992, %v992
      %v1029 = vpack.c.b16 %v993, %v993
      %v1030 = vpack.c.b16 %v994, %v994
      %v1031 = vpack.c.b16 %v995, %v995
      %v1032 = vpack.c.b16 %v996, %v996
      %v1033 = vpack.c.b16 %v997, %v997
      %v1034 = vpack.c.b16 %v998, %v998
      %v1035 = vpack.c.b16 %v999, %v999
      %v1036 = vpack.c.b16 %v1000, %v1000
      %v1037 = vpack.c.b16 %v1001, %v1001
      %v1038 = vpack.c.b16 %v1002, %v1002
      %v1039 = vpack.c.b16 %v1003, %v1003
      %v1040 = vpack.c.b16 %v1004, %v1004
      %v1041 = vpack.c.b16 %v1005, %v1005
      %v1042 = vpack.c.b16 %v1006, %v1006
      %vm1079 = vcmask 519168
      %1080 = vst.msk [vmem:[%s257] sm:$0xf] %vm1079, %v1007
      %1081 = vst.msk [vmem:[%s257 + $0x4] sm:$0xf] %vm1079, %v1008
      %1082 = vst.msk [vmem:[%s257 + $0x8] sm:$0xf] %vm1079, %v1009
      %1083 = vst.msk [vmem:[%s257 + $0xc] sm:$0xf] %vm1079, %v1010
      %1084 = vst.msk [vmem:[%s257 + $0x10] sm:$0xf] %vm1079, %v1011
      %1085 = vst.msk [vmem:[%s257 + $0x14] sm:$0xf] %vm1079, %v1012
      %1086 = vst.msk [vmem:[%s257 + $0x18] sm:$0xf] %vm1079, %v1013
      %1087 = vst.msk [vmem:[%s257 + $0x1c] sm:$0xf] %vm1079, %v1014
      %1088 = vst.msk [vmem:[%s257 + $0x20] sm:$0xf] %vm1079, %v1015
      %1089 = vst.msk [vmem:[%s257 + $0x24] sm:$0xf] %vm1079, %v1016
      %1090 = vst.msk [vmem:[%s257 + $0x28] sm:$0xf] %vm1079, %v1017
      %1091 = vst.msk [vmem:[%s257 + $0x2c] sm:$0xf] %vm1079, %v1018
      %1092 = vst.msk [vmem:[%s257 + $0x30] sm:$0xf] %vm1079, %v1019
      %1093 = vst.msk [vmem:[%s257 + $0x34] sm:$0xf] %vm1079, %v1020
      %1094 = vst.msk [vmem:[%s257 + $0x38] sm:$0xf] %vm1079, %v1021
      %1095 = vst.msk [vmem:[%s257 + $0x3c] sm:$0xf] %vm1079, %v1022
      %1096 = vst.msk [vmem:[%s257 + $0x40] sm:$0xf] %vm1079, %v1023
      %1097 = vst.msk [vmem:[%s257 + $0x44] sm:$0xf] %vm1079, %v1024
      %1098 = vst.msk [vmem:[%s257 + $0x48] sm:$0xf] %vm1079, %v1025
      %1099 = vst.msk [vmem:[%s257 + $0x4c] sm:$0xf] %vm1079, %v1026
      %1100 = vst.msk [vmem:[%s257 + $0x50] sm:$0xf] %vm1079, %v1027
      %1101 = vst.msk [vmem:[%s257 + $0x54] sm:$0xf] %vm1079, %v1028
      %1102 = vst.msk [vmem:[%s257 + $0x58] sm:$0xf] %vm1079, %v1029
      %1103 = vst.msk [vmem:[%s257 + $0x5c] sm:$0xf] %vm1079, %v1030
      %1104 = vst.msk [vmem:[%s257 + $0x60] sm:$0xf] %vm1079, %v1031
      %1105 = vst.msk [vmem:[%s257 + $0x64] sm:$0xf] %vm1079, %v1032
      %1106 = vst.msk [vmem:[%s257 + $0x68] sm:$0xf] %vm1079, %v1033
      %1107 = vst.msk [vmem:[%s257 + $0x6c] sm:$0xf] %vm1079, %v1034
      %1108 = vst.msk [vmem:[%s257 + $0x70] sm:$0xf] %vm1079, %v1035
      %1109 = vst.msk [vmem:[%s257 + $0x74] sm:$0xf] %vm1079, %v1036
      %1110 = vst.msk [vmem:[%s257 + $0x78] sm:$0xf] %vm1079, %v1037
      %1111 = vst.msk [vmem:[%s257 + $0x7c] sm:$0xf] %vm1079, %v1038
      %1112 = vst.msk [vmem:[%s257 + $0x80] sm:$0xf] %vm1079, %v1039
      %1113 = vst.msk [vmem:[%s257 + $0x84] sm:$0xf] %vm1079, %v1040
      %1114 = vst.msk [vmem:[%s257 + $0x88] sm:$0xf] %vm1079, %v1041
      %1115 = vst.msk [vmem:[%s257 + $0x8c] sm:$0xf] %vm1079, %v1042
      %s1116 = smul.u32 36, %s20
      %p1117 = scmp.lt.s32.totalorder %s19, 1
      %s1118 = scalar_select %p1117, %s19, 1
      %p1119 = scmp.lt.s32.totalorder %s1116, 35
      %s1120 = scalar_select %p1119, %s1116, 35
      %s1121 = smul.addr %s1118, 36
      %s1122 = sadd.s32 %s1120, %s1121
      %s1123 = smul.addr %s1122, 4
      %s1124 = scalar_lea.vmem %s4, %s1123
      // Predicated region
      $region37: #{tpu_custom_call.1} parent=35 // pred_check
        %p1125 = pneg %p143
      $region38: #{tpu_custom_call.1} parent=35 // pred_check_branch
        %1127 = sbr.rel (%p1125) target = $region40
      $region39: #{tpu_custom_call.1} parent=35 // pred_region
        %s1128 = smul.u32 36, %s20
      $region40: #{tpu_custom_call.1} parent=35 // pred_fallthru
        _
    $region36: #{tpu_custom_call.1} parent=5 // pred_fallthru
      _
    %p1129 = scmp.le.s32.totalorder 2, %s10
    // Predicated region
    $region41: #{tpu_custom_call.1} parent=5 // pred_check
      %p1130 = pneg %p1129
    $region42: #{tpu_custom_call.1} parent=5 // pred_check_branch
      %1132 = sbr.rel (%p1130) target = $region44
    $region43: #{tpu_custom_call.1} parent=5 // pred_region
      %s1133 = ssub.s32 %s10, 2
      // Predicated region
      $region45: #{tpu_custom_call.1} parent=43 // pred_check
        %p1134 = pneg %p149
      $region46: #{tpu_custom_call.1} parent=43 // pred_check_branch
        %1136 = sbr.rel (%p1134) target = $region48
      $region47: #{tpu_custom_call.1} parent=43 // pred_region
        %s1137 = smul.u32 36, %s22
        %p1138 = scmp.lt.s32.totalorder %s21, 1
        %s1139 = scalar_select %p1138, %s21, 1
        %p1140 = scmp.lt.s32.totalorder %s1137, 35
        %s1141 = scalar_select %p1140, %s1137, 35
        %s1142 = smul.addr %s1139, 36
        %s1143 = sadd.s32 %s1141, %s1142
        %s1144 = smul.addr %s1143, 4
        %s1145 = scalar_lea.vmem %s4, %s1144
      $region48: #{tpu_custom_call.1} parent=43 // pred_fallthru
        _
    $region44: #{tpu_custom_call.1} parent=5 // pred_fallthru
      _
  $region6: #{tpu_custom_call.1} parent=0 // loop_footer
    %s14 = sadd.s32 1, %s10
  $region7: #{tpu_custom_call.1} parent=0 // loop_footer_branch
    %9 = sbr.rel target = $region3
  $region8: #{tpu_custom_call.1} parent=0 // loop_exit
    _

</llo_original>
